<compile_context>
chip_gen: v5e
topology: v5e:2x2
jax: 0.10.0
libtpu: 0.0.40
codegen_flags: <defaults>
</compile_context>

<pallas_src>
import math
import functools

import jax
import jax.numpy as jnp
from jax.experimental import pallas as pl
from jax.experimental.pallas import tpu as pltpu


# ---------------------------------------------------------------------------
# Kernels
# ---------------------------------------------------------------------------
def _conv_relu_kernel(a_ref, w_ref, o_ref, *, scale):
    # a_ref: (1, K, tn) bf16 ; w_ref: (toc, K) bf16 ; o_ref: (1, toc, tn) f32/bf16
    acc = jnp.dot(w_ref[...], a_ref[0], preferred_element_type=jnp.float32)
    acc = acc * scale                                    # f32 epilogue (v5e-safe)
    o_ref[0] = jnp.maximum(acc, 0.0).astype(o_ref.dtype)


def _conv_bias_relu_kernel(a_ref, w_ref, b_ref, o_ref, *, scale):
    # b_ref: (toc, tn) bf16, already pre-scaled by 0.1 in the wrapper.
    acc = jnp.dot(w_ref[...], a_ref[0], preferred_element_type=jnp.float32)
    acc = acc * scale + b_ref[...].astype(jnp.float32)
    o_ref[0] = jnp.maximum(acc, 0.0).astype(o_ref.dtype)


# ---------------------------------------------------------------------------
# Tiling helpers
# ---------------------------------------------------------------------------
_VMEM_BLOCK_BUDGET = 12 * 1024 * 1024     # double-buffered block-set budget (bytes)
_VMEM_LIMIT_BYTES = 32 * 1024 * 1024      # safe on v5e (128 MiB), v6e (128), v7x (64)


def _pick_lane_tile(nj, per_lane_bytes, budget_bytes):
    """Largest legal lane tile: full nj if it fits, else the largest 128-multiple
    divisor of nj that fits the double-buffered VMEM budget."""
    cap = max(128, budget_bytes // max(per_lane_bytes, 1))
    if nj <= cap:
        return nj
    t = min(cap, nj)
    t -= t % 128
    while t >= 128:
        if nj % t == 0:
            return t
        t -= 128
    # No legal smaller tile (nj not a multiple of 128): use the full width and rely
    # on the raised vmem_limit_bytes.  Perf cliff only, never a correctness issue.
    return nj


# ---------------------------------------------------------------------------
# Wrapper
# ---------------------------------------------------------------------------
def nonoverlapping_conv1d_relu(x, weight, bias=None, *, out_dtype=jnp.float32):
    """x: (bs, cin, d); weight: (oc, cin, 1, P); bias: None or (1, oc, d//P).
    Returns (bs, oc, d//P) in PyTorch NCW layout, dtype out_dtype (default f32)."""
    bs, cin, d = x.shape
    oc, cin_w, _, P = weight.shape
    assert cin_w == cin and d % P == 0
    nj = d // P
    K = cin * P

    # Single fused pass (cast -> transpose of the two minor dims): writes bf16 once.
    # A[b, ci*P + p, j] = x[b, ci, j*P + p]; spatial axis stays lane-dense end to end.
    a = (jnp.transpose(x.astype(jnp.bfloat16).reshape(bs, cin, nj, P), (0, 1, 3, 2))
         .reshape(bs, K, nj))
    # W2[o, ci*P + p] = weight[o, ci, 0, p]  (free reshape, matches A's row order).
    w2 = weight.reshape(oc, K).astype(jnp.bfloat16)

    out_itemsize = jnp.dtype(out_dtype).itemsize
    has_bias = bias is not None

    # ---- lane tile: VMEM-budgeted, 128-multiple divisor of nj (or full width) ----
    per_lane_bytes = 2 * (K * 2 + oc * out_itemsize + (oc * 2 if has_bias else 0))
    tn = _pick_lane_tile(nj, per_lane_bytes, _VMEM_BLOCK_BUDGET)
    n_j = nj // tn

    # ---- v7x megacore: guarantee >= 2 parallel grid steps ----
    n_oc = 1
    if bs * n_j < 2 and oc % 2 == 0 and (oc // 2) % 8 == 0:
        n_oc = 2
    toc = oc // n_oc

    grid = (bs, n_oc, n_j)
    scale = 1.0 / math.sqrt(cin)

    in_specs = [
        pl.BlockSpec((1, K, tn), lambda b, oi, j: (b, 0, j)),
        pl.BlockSpec((toc, K), lambda b, oi, j: (oi, 0)),
    ]
    operands = [a, w2]
    if has_bias:
        assert bias.shape == (1, oc, nj)
        # Fold the 0.1 once, stream as bf16 (halves the bias bytes), widen in-kernel.
        bias_s = (bias[0] * 0.1).astype(jnp.bfloat16)
        in_specs.append(pl.BlockSpec((toc, tn), lambda b, oi, j: (oi, j)))
        operands.append(bias_s)
        kernel = functools.partial(_conv_bias_relu_kernel, scale=scale)
    else:
        kernel = functools.partial(_conv_relu_kernel, scale=scale)

    return pl.pallas_call(
        kernel,
        out_shape=jax.ShapeDtypeStruct((bs, oc, nj), out_dtype),
        grid=grid,
        in_specs=in_specs,
        out_specs=pl.BlockSpec((1, toc, tn), lambda b, oi, j: (b, oi, j)),
        compiler_params=pltpu.CompilerParams(
            dimension_semantics=("parallel", "parallel", "parallel"),
            vmem_limit_bytes=_VMEM_LIMIT_BYTES),
    )(*operands)


# ---------------------------------------------------------------------------
# Pure-jnp reference (mirrors the PyTorch broadcasting exactly)
# ---------------------------------------------------------------------------
def ref_forward(x, weight, bias=None):
    bs, cin, d = x.shape
    P = weight.shape[-1]
    xv = x.reshape(bs, 1, cin, d // P, P)
    y = (xv * weight[None]).sum(axis=(-1, -3)) * (1.0 / math.sqrt(cin))
    if bias is not None:
        y = y + bias * 0.1
    return jnp.maximum(y, 0.0)


if __name__ == "__main__":
    batch, cin, d = 2, 4, 16
    oc, P = 32, 2
    nj = d // P

    key = jax.random.PRNGKey(0)
    kx, kw, kb, kw2 = jax.random.split(key, 4)
    x = jax.random.normal(kx, (batch, cin, d), jnp.float32)
    w = jax.random.normal(kw, (oc, cin, 1, P), jnp.float32)
    b = jax.random.normal(kb, (1, oc, nj), jnp.float32)
    w_next = jax.random.normal(kw2, (oc, oc, 1, P), jnp.float32)  # 2nd layer (chaining)

    conv = jax.jit(nonoverlapping_conv1d_relu, static_argnames=("out_dtype",))

    # Kernel quantizes inputs to bf16 (f32 accumulation), so tight checks compare
    # against a reference fed the same bf16-rounded values, plus loose f32 checks.
    def q(t):
        return t.astype(jnp.bfloat16).astype(jnp.float32)

    # --- no-bias path (module default) ---
    y = jax.block_until_ready(conv(x, w))
    assert y.shape == (batch, oc, nj) and y.dtype == jnp.float32
    assert jnp.allclose(y, ref_forward(q(x), q(w)), rtol=1e-4, atol=1e-4)
    assert jnp.allclose(y, ref_forward(x, w), rtol=1e-1, atol=1e-1)

    # --- bias path (0.1 folded + bf16 bias stream in the kernel) ---
    yb = jax.block_until_ready(conv(x, w, b))
    b_eff = (b * 0.1).astype(jnp.bfloat16).astype(jnp.float32) * 10.0  # same rounding
    assert jnp.allclose(yb, ref_forward(q(x), q(w), b_eff), rtol=1e-4, atol=1e-4)
    assert jnp.allclose(yb, ref_forward(x, w, b), rtol=1e-1, atol=1e-1)

    # --- optional bf16 output (halves writeback traffic) ---
    yh = jax.block_until_ready(conv(x, w, out_dtype=jnp.bfloat16))
    assert yh.dtype == jnp.bfloat16
    assert jnp.allclose(yh.astype(jnp.float32), ref_forward(x, w), rtol=1e-1, atol=1e-1)

    # --- bs=1: exercises the oc-split path (>=2 parallel grid steps for v7x megacore) ---
    y1 = jax.block_until_ready(conv(x[:1], w))
    assert jnp.allclose(y1, ref_forward(q(x[:1]), q(w)), rtol=1e-4, atol=1e-4)

    # --- chaining: NCW out == NCW in, stacked layers need no inter-layer transposes ---
    y2 = jax.block_until_ready(conv(y, w_next))
    assert y2.shape == (batch, oc, nj // P)
    assert jnp.allclose(y2, ref_forward(ref_forward(x, w), w_next), rtol=1e-1, atol=1e-1)

    print("KERNEL_OK")
</pallas_src>

<mosaic_0001>
module attributes {stable_mosaic.version = 11 : i64} {
  func.func @_conv_relu_kernel(%arg0: i32, %arg1: i32, %arg2: i32, %arg3: memref<1x8x8xbf16, #tpu.memory_space<vmem>>, %arg4: memref<32x8xbf16, #tpu.memory_space<vmem>>, %arg5: memref<1x32x8xf32, #tpu.memory_space<vmem>>) attributes {dimension_semantics = [#tpu.dimension_semantics<parallel>, #tpu.dimension_semantics<parallel>, #tpu.dimension_semantics<parallel>], iteration_bounds = array<i64: 2, 1, 1>, scalar_prefetch = 0 : i64, scratch_operands = 0 : i64, tpu.core_type = #tpu.core_type<tc>, window_params = [{transform_indices = @transform_0, window_bounds = array<i64: 1, 8, 8>}, {transform_indices = @transform_1, window_bounds = array<i64: 32, 8>}, {transform_indices = @transform_2, window_bounds = array<i64: 1, 32, 8>}]} {
    %c0 = arith.constant 0 : index
    %c0_0 = arith.constant 0 : index
    %0 = vector.load %arg4[%c0, %c0_0] : memref<32x8xbf16, #tpu.memory_space<vmem>>, vector<32x8xbf16>
    %c0_1 = arith.constant 0 : index
    %c0_2 = arith.constant 0 : index
    %c0_3 = arith.constant 0 : index
    %1 = vector.load %arg3[%c0_1, %c0_2, %c0_3] : memref<1x8x8xbf16, #tpu.memory_space<vmem>>, vector<1x8x8xbf16>
    %2 = vector.shape_cast %1 : vector<1x8x8xbf16> to vector<8x8xbf16>
    %cst = arith.constant dense<0.000000e+00> : vector<32x8xf32>
    %3 = tpu.matmul %0, %2, %cst {dimension_numbers = #tpu.dot_dimension_numbers<[1], [0], [0], [1], [0, 0, 1, 1], [], []>} : vector<32x8xbf16>, vector<8x8xbf16>, vector<32x8xf32> -> vector<32x8xf32>
    %cst_4 = arith.constant 5.000000e-01 : f32
    %4 = vector.broadcast %cst_4 : f32 to vector<32x8xf32>
    %5 = arith.mulf %3, %4 : vector<32x8xf32>
    %cst_5 = arith.constant 0.000000e+00 : f32
    %6 = vector.broadcast %cst_5 : f32 to vector<32x8xf32>
    %7 = arith.maximumf %5, %6 : vector<32x8xf32>
    %c0_6 = arith.constant 0 : index
    %c0_7 = arith.constant 0 : index
    %c0_8 = arith.constant 0 : index
    %8 = vector.load %arg5[%c0_6, %c0_7, %c0_8] : memref<1x32x8xf32, #tpu.memory_space<vmem>>, vector<1x32x8xf32>
    %9 = vector.shape_cast %8 : vector<1x32x8xf32> to vector<32x8xf32>
    %10 = vector.shape_cast %7 : vector<32x8xf32> to vector<1x32x8xf32>
    tpu.vector_store %arg5[%c0_6, %c0_7, %c0_8], %10 {strides = array<i32>} : memref<1x32x8xf32, #tpu.memory_space<vmem>>, vector<1x32x8xf32>,
    return
  }
  func.func @transform_0(%arg0: i32, %arg1: i32, %arg2: i32) -> (i32, i32, i32) {
    %c0_i32 = arith.constant 0 : i32
    %c0_i32_0 = arith.constant 0 : i32
    return %arg0, %c0_i32, %arg2 : i32, i32, i32
  }
  func.func @transform_1(%arg0: i32, %arg1: i32, %arg2: i32) -> (i32, i32) {
    %c0_i32 = arith.constant 0 : i32
    %c0_i32_0 = arith.constant 0 : i32
    return %arg1, %c0_i32 : i32, i32
  }
  func.func @transform_2(%arg0: i32, %arg1: i32, %arg2: i32) -> (i32, i32, i32) {
    %c0_i32 = arith.constant 0 : i32
    return %arg0, %arg1, %arg2 : i32, i32, i32
  }
}

</mosaic_0001>

<llo_original>
// kernel: nonoverlapping_conv1d_relu.1
$region0: #{nonoverlapping_conv1d_relu.1}
  #allocation0 [shape = 'u32[]', space=smem, size = 0x4, offset = 0x4, fixed_abs, tag = 'smem constant byte address 0x4 - core index']
  #allocation1 [shape = 'u32[72,128]{1,0:T(1,128)}', space=vmem, size = 0x9000, scoped, tag = 'internal scratch']
  %s0 = inlined_call_operand.vmem [shape: bf16[2,8,8], index: 0, kind: input, shape index: {}]
  %s1 = inlined_call_operand.vmem [shape: bf16[32,8], index: 1, kind: input, shape index: {}]
  %s2 = inlined_call_operand.vmem [shape: f32[2,32,8], index: 2, kind: output, shape index: {}]
  %s3 = sld [smem:[#allocation0]]
  $region41: #{nonoverlapping_conv1d_relu.1} parent=0
    _
  %s5 = ssub.s32 1, %s3
  %s6 = scalar_select 0, %s5, %s3
  loop: start=0, step=1, limit=4
  $region2: #{nonoverlapping_conv1d_relu.1} parent=0 // loop_pre_header
    _
  $region3: #{nonoverlapping_conv1d_relu.1} parent=0 // loop_header
    %s8 = sphi 0, %s12
    %p9 = scmp.ge.s32.totalorder %s8, 4
    %s15 = sphi 0, %s34
    %s16 = sphi 0, %s30
    %s17 = sphi 0, %s26
    %s18 = sphi 0, %s15
    %s19 = sphi 0, %s16
    %s20 = sphi 0, %s17
    %s21 = sphi 0, %s18
    %s22 = sphi 0, %s19
    %s23 = sphi 0, %s20
    %s39 = sphi 0, %s41
    %s42 = sphi 0, %s39
    %s43 = sphi 0, %s42
    %s59 = sphi 0, %s43
    %s65 = sphi 0, %s67
    %s68 = sphi 0, %s65
    %s69 = sphi 0, %s68
    %s85 = sphi 0, %s69
    %s95 = sphi 0, %s97
    %s98 = sphi 0, %s95
    %s99 = sphi 0, %s98
    %s115 = sphi 0, %s99
  $region4: #{nonoverlapping_conv1d_relu.1} parent=0 // loop_header_branch
    %11 = sbr.rel (%p9) target = $region8
  $region5: #{nonoverlapping_conv1d_relu.1} parent=0 // loop_body
    %s13 = ssub.s32 %s8, 1
    %s14 = ssub.s32 %s8, 2
    %s24 = sadd.s32 1, %s17
    %p25 = scmp.ge.s32.totalorder %s24, 1
    %s26 = scalar_select %p25, 0, %s24
    %s27 = sadd.s32 1, %s16
    %s28 = scalar_select %p25, %s27, %s16
    %p29 = scmp.ge.s32.totalorder %s28, 1
    %s30 = scalar_select %p29, 0, %s28
    %s31 = sadd.s32 1, %s15
    %s32 = scalar_select %p29, %s31, %s15
    %p33 = scmp.ge.s32.totalorder %s32, 2
    %s34 = scalar_select %p33, 0, %s32
    %s35 = ssub.s32 %s15, %s34
    %s36 = ssub.s32 %s17, %s26
    %s37 = sor.u32 %s35, %s36
    %p38 = scmp.eq.s32.totalorder %s37, 0
    %s40 = sadd.s32 %s39, 1
    %s41 = scalar_select %p38, %s39, %s40
    %p44 = pneg %p38
    %p45 = scmp.eq.s32.totalorder %s8, 1
    %p46 = por %p44, %p45
    %p47 = scmp.ne.s32.totalorder %s39, %s42
    %p48 = scmp.eq.s32.totalorder %s8, 0
    %p49 = por %p47, %p48
    %p50 = scmp.ne.s32.totalorder %s39, %s42
    %p51 = scmp.eq.s32.totalorder %s13, 1
    %p52 = por %p50, %p51
    %p53 = scmp.ne.s32.totalorder %s42, %s43
    %p54 = scmp.eq.s32.totalorder %s13, 0
    %p55 = por %p53, %p54
    %p56 = scmp.ne.s32.totalorder %s42, %s43
    %p57 = scmp.eq.s32.totalorder %s14, 1
    %p58 = por %p56, %p57
    %p60 = scmp.ne.s32.totalorder %s43, %s59
    %p61 = scmp.eq.s32.totalorder %s14, 0
    %p62 = por %p60, %p61
    %s63 = ssub.s32 %s16, %s30
    %p64 = scmp.eq.s32.totalorder %s63, 0
    %s66 = sadd.s32 %s65, 1
    %s67 = scalar_select %p64, %s65, %s66
    %p70 = pneg %p64
    %p71 = scmp.eq.s32.totalorder %s8, 1
    %p72 = por %p70, %p71
    %p73 = scmp.ne.s32.totalorder %s65, %s68
    %p74 = scmp.eq.s32.totalorder %s8, 0
    %p75 = por %p73, %p74
    %p76 = scmp.ne.s32.totalorder %s65, %s68
    %p77 = scmp.eq.s32.totalorder %s13, 1
    %p78 = por %p76, %p77
    %p79 = scmp.ne.s32.totalorder %s68, %s69
    %p80 = scmp.eq.s32.totalorder %s13, 0
    %p81 = por %p79, %p80
    %p82 = scmp.ne.s32.totalorder %s68, %s69
    %p83 = scmp.eq.s32.totalorder %s14, 1
    %p84 = por %p82, %p83
    %p86 = scmp.ne.s32.totalorder %s69, %s85
    %p87 = scmp.eq.s32.totalorder %s14, 0
    %p88 = por %p86, %p87
    %s89 = ssub.s32 %s15, %s34
    %s90 = ssub.s32 %s16, %s30
    %s91 = sor.u32 %s89, %s90
    %s92 = ssub.s32 %s17, %s26
    %s93 = sor.u32 %s91, %s92
    %p94 = scmp.eq.s32.totalorder %s93, 0
    %s96 = sadd.s32 %s95, 1
    %s97 = scalar_select %p94, %s95, %s96
    %p100 = pneg %p94
    %p101 = scmp.eq.s32.totalorder %s8, 1
    %p102 = por %p100, %p101
    %p103 = scmp.ne.s32.totalorder %s95, %s98
    %p104 = scmp.eq.s32.totalorder %s8, 0
    %p105 = por %p103, %p104
    %p106 = scmp.ne.s32.totalorder %s95, %s98
    %p107 = scmp.eq.s32.totalorder %s13, 1
    %p108 = por %p106, %p107
    %p109 = scmp.ne.s32.totalorder %s98, %s99
    %p110 = scmp.eq.s32.totalorder %s13, 0
    %p111 = por %p109, %p110
    %p112 = scmp.ne.s32.totalorder %s98, %s99
    %p113 = scmp.eq.s32.totalorder %s14, 1
    %p114 = por %p112, %p113
    %p116 = scmp.ne.s32.totalorder %s99, %s115
    %p117 = scmp.eq.s32.totalorder %s14, 0
    %p118 = por %p116, %p117
    %p119 = scmp.le.s32.totalorder 1, %s8
    %p120 = scmp.lt.s32.totalorder %s8, 3
    %p121 = pnand %p119, %p120
    %p122 = pneg %p121
    // Predicated region
    $region9: #{nonoverlapping_conv1d_relu.1} parent=5 // pred_check
      _
    $region10: #{nonoverlapping_conv1d_relu.1} parent=5 // pred_check_branch
      %124 = sbr.rel (%p121) target = $region12
    $region11: #{nonoverlapping_conv1d_relu.1} parent=5 // pred_region
      %s125 = ssub.s32 %s8, 1
      // Predicated region
      $region13: #{nonoverlapping_conv1d_relu.1} parent=11 // pred_check
        %p126 = pneg %p81
      $region14: #{nonoverlapping_conv1d_relu.1} parent=11 // pred_check_branch
        %128 = sbr.rel (%p126) target = $region16
      $region15: #{nonoverlapping_conv1d_relu.1} parent=11 // pred_region
        %s129 = smul.u32 4, %s19
        %p130 = scmp.lt.s32.totalorder %s129, 3
        %s131 = scalar_select %p130, %s129, 3
        %s132 = smul.addr %s131, 4
        %s133 = scalar_lea.vmem %s1, %s132
        %s134 = smul.u32 4, %s19
      $region16: #{nonoverlapping_conv1d_relu.1} parent=11 // pred_fallthru
        _
    $region12: #{nonoverlapping_conv1d_relu.1} parent=5 // pred_fallthru
      _
    %p135 = scmp.lt.s32.totalorder %s8, 2
    // Predicated region
    $region17: #{nonoverlapping_conv1d_relu.1} parent=5 // pred_check
      %p136 = pneg %p135
    $region18: #{nonoverlapping_conv1d_relu.1} parent=5 // pred_check_branch
      %138 = sbr.rel (%p136) target = $region20
    $region19: #{nonoverlapping_conv1d_relu.1} parent=5 // pred_region
      // Predicated region
      $region21: #{nonoverlapping_conv1d_relu.1} parent=19 // pred_check
        %p139 = pneg %p49
      $region22: #{nonoverlapping_conv1d_relu.1} parent=19 // pred_check_branch
        %141 = sbr.rel (%p139) target = $region24
      $region23: #{nonoverlapping_conv1d_relu.1} parent=19 // pred_region
        %p142 = scmp.lt.s32.totalorder %s15, 1
        %s143 = scalar_select %p142, %s15, 1
        %p144 = scmp.lt.s32.totalorder %s17, 0
        %s145 = scalar_select %p144, %s17, 0
        %s146 = sadd.s32 %s145, %s143
        %s147 = smul.addr %s146, 4
        %s148 = scalar_lea.vmem %s0, %s147
      $region24: #{nonoverlapping_conv1d_relu.1} parent=19 // pred_fallthru
        _
    $region20: #{nonoverlapping_conv1d_relu.1} parent=5 // pred_fallthru
      _
    %p149 = scmp.le.s32.totalorder 1, %s8
    %p150 = scmp.lt.s32.totalorder %s8, 3
    %p151 = pnand %p149, %p150
    %p152 = pneg %p151
    // Predicated region
    $region25: #{nonoverlapping_conv1d_relu.1} parent=5 // pred_check
      _
    $region26: #{nonoverlapping_conv1d_relu.1} parent=5 // pred_check_branch
      %154 = sbr.rel (%p151) target = $region28
    $region27: #{nonoverlapping_conv1d_relu.1} parent=5 // pred_region
      %s155 = ssub.s32 %s8, 1
      %p156 = scmp.lt.s32.totalorder %s18, 1
      %s157 = scalar_select %p156, %s18, 1
      %p158 = scmp.lt.s32.totalorder %s20, 0
      %s159 = scalar_select %p158, %s20, 0
      %s160 = sadd.s32 %s159, %s157
      %s161 = smul.addr %s160, 4
      %s162 = scalar_lea.vmem %s0, %s161
      %p163 = pneg %p55
      %p164 = pneg %p52
      %s165 = smul.u32 4, %s19
      %p166 = scmp.lt.s32.totalorder %s165, 3
      %s167 = scalar_select %p166, %s165, 3
      %s168 = smul.addr %s167, 4
      %s169 = scalar_lea.vmem %s1, %s168
      %p170 = pneg %p81
      %p171 = pneg %p78
      %p172 = pneg %p111
      %p173 = pneg %p108
      %s174 = smul.u32 4, %s19
      %p175 = scmp.lt.s32.totalorder %s18, 1
      %s176 = scalar_select %p175, %s18, 1
      %p177 = scmp.lt.s32.totalorder %s174, 3
      %s178 = scalar_select %p177, %s174, 3
      %p179 = scmp.lt.s32.totalorder %s20, 0
      %s180 = scalar_select %p179, %s20, 0
      %s181 = sadd.s32 %s180, %s178
      %s182 = smul.addr %s176, 4
      %s183 = sadd.s32 %s181, %s182
      %s184 = smul.addr %s183, 8
      %s185 = scalar_lea.vmem %s2, %s184
      %p186 = scmp.lt.s32.totalorder %s18, 1
      %s187 = scalar_select %p186, %s18, 1
      %p188 = scmp.lt.s32.totalorder %s20, 0
      %s189 = scalar_select %p188, %s20, 0
      %s190 = sadd.s32 %s189, %s187
      %s191 = smul.addr %s190, 4
      %s192 = scalar_lea.vmem %s0, %s191
      %s193 = smul.u32 4, %s19
      %p194 = scmp.lt.s32.totalorder %s193, 3
      %s195 = scalar_select %p194, %s193, 3
      %s196 = smul.addr %s195, 4
      %s197 = scalar_lea.vmem %s1, %s196
      %s198 = smul.u32 4, %s19
      %s199 = smul.u32 4, %s19
      %p200 = scmp.lt.s32.totalorder %s18, 1
      %s201 = scalar_select %p200, %s18, 1
      %p202 = scmp.lt.s32.totalorder %s199, 3
      %s203 = scalar_select %p202, %s199, 3
      %p204 = scmp.lt.s32.totalorder %s20, 0
      %s205 = scalar_select %p204, %s20, 0
      %s206 = sadd.s32 %s205, %s203
      %s207 = smul.addr %s201, 4
      %s208 = sadd.s32 %s206, %s207
      %s209 = smul.addr %s208, 8
      %s210 = scalar_lea.vmem %s2, %s209
      %s211 = smul.u32 4, %s19
      %v213 = vld [vmem:[%s197] sm:$0xf]
      %v214 = vld [vmem:[%s197 + $0x4] sm:$0xf]
      %v215 = vld [vmem:[%s197 + $0x8] sm:$0xf]
      %v216 = vld [vmem:[%s197 + $0xc] sm:$0xf]
      %v217 = vld [vmem:[%s192] sm:$0xf]
      %v222 = vunpack.c.l.b16 %v213
      %v223 = vunpack.c.l.b16 %v214
      %v224 = vunpack.c.l.b16 %v215
      %v225 = vunpack.c.l.b16 %v216
      %v226 = vpack.c.b16 %v223, %v222
      %v227 = vpack.c.b16 %v225, %v224
      %vm228 = vcmask 64512
      %v230 = vsel %vm228, %v226, 0
      %v233 = vsel %vm228, %v227, 0
      %vm235 = vcmask 1043456
      %v237 = vsel %vm235, %v217, 0
      %239 = vmatpush.bf16.msra.mxu0 0
      %240 = vmatpush.bf16.msra.mxu0 0
      %241 = vmatpush.bf16.msra.mxu0 0
      %242 = vmatpush.bf16.msra.mxu0 0
      %243 = vmatpush.bf16.msra.mxu0 0
      %244 = vmatpush.bf16.msra.mxu0 0
      %245 = vmatpush.bf16.msra.mxu0 0
      %246 = vmatpush.bf16.msra.mxu0 %v237
      %247 = vmatmul.bf16.gmra.mxu0 %v230
      %v248 = vpop.f32.mrf.mxu0
      %v249 = vadd.f32 0.0, %v248
      %v250 = vpop.f32.mrf.mxu0
      %v251 = vadd.f32 0.0, %v250
      %252 = vmatmul.bf16.gmra.mxu0 %v233
      %v253 = vpop.f32.mrf.mxu0
      %v254 = vadd.f32 0.0, %v253
      %v255 = vpop.f32.mrf.mxu0
      %v256 = vadd.f32 0.0, %v255
      %257 = vdwg.mxu0
      %v258 = vmul.f32 %v249, 0.5
      %v259 = vmul.f32 %v251, 0.5
      %v260 = vmul.f32 %v254, 0.5
      %v261 = vmul.f32 %v256, 0.5
      %v262 = vmax.f32 %v258, 0.0
      %v263 = vmax.f32 %v259, 0.0
      %v264 = vmax.f32 %v260, 0.0
      %v265 = vmax.f32 %v261, 0.0
      %266 = vst.msk [vmem:[%s210] sm:$0xff] %vm228, %v262
      %267 = vst.msk [vmem:[%s210 + $0x8] sm:$0xff] %vm228, %v263
      %268 = vst.msk [vmem:[%s210 + $0x10] sm:$0xff] %vm228, %v264
      %269 = vst.msk [vmem:[%s210 + $0x18] sm:$0xff] %vm228, %v265
      %s270 = smul.u32 4, %s19
      %p271 = scmp.lt.s32.totalorder %s18, 1
      %s272 = scalar_select %p271, %s18, 1
      %p273 = scmp.lt.s32.totalorder %s270, 3
      %s274 = scalar_select %p273, %s270, 3
      %p275 = scmp.lt.s32.totalorder %s20, 0
      %s276 = scalar_select %p275, %s20, 0
      %s277 = sadd.s32 %s276, %s274
      %s278 = smul.addr %s272, 4
      %s279 = sadd.s32 %s277, %s278
      %s280 = smul.addr %s279, 8
      %s281 = scalar_lea.vmem %s2, %s280
      // Predicated region
      $region29: #{nonoverlapping_conv1d_relu.1} parent=27 // pred_check
        %p282 = pneg %p108
      $region30: #{nonoverlapping_conv1d_relu.1} parent=27 // pred_check_branch
        %284 = sbr.rel (%p282) target = $region32
      $region31: #{nonoverlapping_conv1d_relu.1} parent=27 // pred_region
        %s285 = smul.u32 4, %s19
      $region32: #{nonoverlapping_conv1d_relu.1} parent=27 // pred_fallthru
        _
    $region28: #{nonoverlapping_conv1d_relu.1} parent=5 // pred_fallthru
      _
    %p286 = scmp.le.s32.totalorder 2, %s8
    // Predicated region
    $region33: #{nonoverlapping_conv1d_relu.1} parent=5 // pred_check
      %p287 = pneg %p286
    $region34: #{nonoverlapping_conv1d_relu.1} parent=5 // pred_check_branch
      %289 = sbr.rel (%p287) target = $region36
    $region35: #{nonoverlapping_conv1d_relu.1} parent=5 // pred_region
      %s290 = ssub.s32 %s8, 2
      // Predicated region
      $region37: #{nonoverlapping_conv1d_relu.1} parent=35 // pred_check
        %p291 = pneg %p114
      $region38: #{nonoverlapping_conv1d_relu.1} parent=35 // pred_check_branch
        %293 = sbr.rel (%p291) target = $region40
      $region39: #{nonoverlapping_conv1d_relu.1} parent=35 // pred_region
        %s294 = smul.u32 4, %s22
        %p295 = scmp.lt.s32.totalorder %s21, 1
        %s296 = scalar_select %p295, %s21, 1
        %p297 = scmp.lt.s32.totalorder %s294, 3
        %s298 = scalar_select %p297, %s294, 3
        %p299 = scmp.lt.s32.totalorder %s23, 0
        %s300 = scalar_select %p299, %s23, 0
        %s301 = sadd.s32 %s300, %s298
        %s302 = smul.addr %s296, 4
        %s303 = sadd.s32 %s301, %s302
        %s304 = smul.addr %s303, 8
        %s305 = scalar_lea.vmem %s2, %s304
      $region40: #{nonoverlapping_conv1d_relu.1} parent=35 // pred_fallthru
        _
    $region36: #{nonoverlapping_conv1d_relu.1} parent=5 // pred_fallthru
      _
  $region6: #{nonoverlapping_conv1d_relu.1} parent=0 // loop_footer
    %s12 = sadd.s32 1, %s8
  $region7: #{nonoverlapping_conv1d_relu.1} parent=0 // loop_footer_branch
    %7 = sbr.rel target = $region3
  $region8: #{nonoverlapping_conv1d_relu.1} parent=0 // loop_exit
    _

</llo_original>
